<compile_context>
chip_gen: v5e
topology: v5e:2x2
jax: 0.10.0
libtpu: 0.0.40
codegen_flags: <defaults>
</compile_context>

<pallas_src>
import jax
import jax.numpy as jnp
from jax import lax
from jax.experimental import pallas as pl
from jax.experimental.pallas import tpu as pltpu

_LANE = 128
_TARGET_BLOCK_BYTES = 4 << 20      # per input, per pipeline buffer (f32-equivalent)
_VMEM_LIMIT_BYTES = 48 << 20       # < v7x's 64 MiB physical; v5e/v6e have 128 MiB
_SMALL_N_FAST_PATH = 16384         # below this a fused jnp expression beats a launch


def _softplus_pair_mean(fake, real, n):
    """mean(softplus(fake)) + mean(softplus(-real)) as one fused jnp expression."""
    f = fake.astype(jnp.float32)
    r = real.astype(jnp.float32)
    s = jnp.sum(jnp.maximum(f, 0.0) + jnp.maximum(-r, 0.0)
                + jnp.log((1.0 + jnp.exp(-jnp.abs(f))) * (1.0 + jnp.exp(-jnp.abs(r)))))
    return s / jnp.float32(max(n, 1))


def disc_adversarial_loss(fake_disc_out, real_disc_out, *, block_rows=None):
    """JAX/Pallas equivalent of DiscAdversarialLoss.forward. Returns scalar f32.

    block_rows: optional override of the H-tile size (multiple of 8); mainly for tests.
    """
    assert fake_disc_out.shape == real_disc_out.shape, "disc outputs must match"
    shape = fake_disc_out.shape
    n = 1
    for s in shape:
        n *= int(s)

    # Fast path: tiny tensors (e.g. small patch-GAN maps) or degenerate ranks.
    if n < _SMALL_N_FAST_PATH or len(shape) < 2:
        return _softplus_pair_mean(fake_disc_out, real_disc_out, n)

    H, W = int(shape[-2]), int(shape[-1])
    lead_shape = tuple(int(s) for s in shape[:-2])
    n_lead = len(lead_shape)
    n_grid = n_lead + 1

    # ---- tile geometry -------------------------------------------------------
    if block_rows is not None:
        assert block_rows >= 8 and block_rows % 8 == 0, "block_rows must be a multiple of 8"
        rows_budget = block_rows
    else:
        w_padded = -(-W // _LANE) * _LANE                  # lanes resident per row
        rows_budget = max(8, (_TARGET_BLOCK_BYTES // (w_padded * 4)) // 8 * 8)

    # Block last-two dims must be (mult-of-8, mult-of-128) OR equal to the full dims.
    th = H if H <= rows_budget else rows_budget            # rows_budget is a mult of 8
    num_h = -(-H // th)
    ragged = (H % th) != 0                                 # only possible when th < H
    rem = H - (num_h - 1) * th                             # valid rows in last H-tile
    acc_rows = 8 if th % 8 == 0 else 1
    inv_n = 1.0 / n

    grid = lead_shape + (num_h,)
    block_shape = (pl.Squeezed(),) * n_lead + (th, W)

    def index_map(*g):
        *lead, h = g
        return (*lead, h, 0)

    # ---- kernel --------------------------------------------------------------
    def kernel(fake_ref, real_ref, out_ref, acc_ref):
        first = pl.program_id(0) == 0
        last = pl.program_id(0) == pl.num_programs(0) - 1
        for ax in range(1, n_grid):
            first = jnp.logical_and(first, pl.program_id(ax) == 0)
            last = jnp.logical_and(last, pl.program_id(ax) == pl.num_programs(ax) - 1)

        @pl.when(first)
        def _():
            acc_ref[...] = jnp.zeros_like(acc_ref)

        f = fake_ref[...].astype(jnp.float32)              # (th, W)
        r = real_ref[...].astype(jnp.float32)
        # softplus(f) + softplus(-r): 2 exp + 1 log per element pair (EUP),
        # relu/abs/add on the VPU.
        t = (jnp.maximum(f, 0.0) + jnp.maximum(-r, 0.0)
             + jnp.log((1.0 + jnp.exp(-jnp.abs(f))) * (1.0 + jnp.exp(-jnp.abs(r)))))

        def partial(v):
            if th % 8 == 0:
                # Pure-VALU partial reduce across sublane groups -> (8, W).
                return v.reshape(th // 8, 8, W).sum(axis=0)
            # Tiny-H (< 8 rows) fallback: one sublane reduce -> (1, W).
            return jnp.sum(v, axis=0, keepdims=True)

        if ragged:
            h = pl.program_id(n_grid - 1)

            @pl.when(h < num_h - 1)
            def _():
                acc_ref[...] += partial(t)

            @pl.when(h == num_h - 1)
            def _():
                # Mask the rows past H (DMA'd data there is undefined).
                row = lax.broadcasted_iota(jnp.int32, (th, W), 0)
                acc_ref[...] += partial(jnp.where(row < rem, t, 0.0))
        else:
            acc_ref[...] += partial(t)

        @pl.when(last)
        def _():
            out_ref[0, 0] = jnp.sum(acc_ref[...]) * inv_n

    out = pl.pallas_call(
        kernel,
        out_shape=jax.ShapeDtypeStruct((1, 1), jnp.float32),
        grid=grid,
        in_specs=[
            pl.BlockSpec(block_shape, index_map),
            pl.BlockSpec(block_shape, index_map),
        ],
        out_specs=pl.BlockSpec(memory_space=pltpu.SMEM),
        scratch_shapes=[pltpu.VMEM((acc_rows, W), jnp.float32)],
        compiler_params=pltpu.CompilerParams(
            dimension_semantics=("arbitrary",) * n_grid,
            vmem_limit_bytes=_VMEM_LIMIT_BYTES),
    )(fake_disc_out, real_disc_out)
    return out[0, 0]


def _reference_loss(fake, real):
    """Pure-JAX reference mirroring torch BCEWithLogitsLoss semantics."""
    fake = fake.astype(jnp.float32)
    real = real.astype(jnp.float32)

    def bce_with_logits(x, y):
        return jnp.mean(jnp.maximum(x, 0.0) - x * y + jnp.log1p(jnp.exp(-jnp.abs(x))))

    loss_real = bce_with_logits(real, jnp.ones_like(real))
    loss_fake = bce_with_logits(fake, jnp.zeros_like(fake))
    return loss_fake + loss_real


if __name__ == "__main__":
    key = jax.random.PRNGKey(0)
    ks = jax.random.split(key, 6)

    # 1) Tiny patch-GAN logits: fused fast path (no kernel launch).
    fake_t = jax.random.normal(ks[0], (2, 1, 16, 16), dtype=jnp.float32)
    real_t = jax.random.normal(ks[1], (2, 1, 16, 16), dtype=jnp.float32)
    out_t = jax.block_until_ready(disc_adversarial_loss(fake_t, real_t))
    assert jnp.allclose(out_t, _reference_loss(fake_t, real_t), rtol=1e-5, atol=1e-5), out_t

    # 2) Kernel path, 8-aligned H: full-H block + pure-VALU partial reduce.
    fake_a = jax.random.normal(ks[2], (2, 4, 48, 64), dtype=jnp.float32)
    real_a = jax.random.normal(ks[3], (2, 4, 48, 64), dtype=jnp.float32)
    out_a = jax.block_until_ready(disc_adversarial_loss(fake_a, real_a))
    assert jnp.allclose(out_a, _reference_loss(fake_a, real_a), rtol=1e-5, atol=1e-5), out_a

    # 3) Kernel path, H not a multiple of 8 taken as a single full-dim block.
    fake_b = jax.random.normal(ks[4], (2, 1, 100, 96), dtype=jnp.float32)
    real_b = jax.random.normal(ks[5], (2, 1, 100, 96), dtype=jnp.float32)
    out_b = jax.block_until_ready(disc_adversarial_loss(fake_b, real_b))
    assert jnp.allclose(out_b, _reference_loss(fake_b, real_b), rtol=1e-5, atol=1e-5), out_b

    # 4) Same data, forced small block -> multi-tile grid with a ragged, masked last tile.
    out_c = jax.block_until_ready(disc_adversarial_loss(fake_b, real_b, block_rows=32))
    assert jnp.allclose(out_c, _reference_loss(fake_b, real_b), rtol=1e-5, atol=1e-5), out_c

    # 5) bf16 inputs (half the HBM traffic); kernel upcasts per tile.
    fake_h = fake_a.astype(jnp.bfloat16)
    real_h = real_a.astype(jnp.bfloat16)
    out_h = jax.block_until_ready(disc_adversarial_loss(fake_h, real_h))
    assert jnp.allclose(out_h, _reference_loss(fake_h, real_h), rtol=1e-5, atol=1e-5), out_h

    print("KERNEL_OK")
</pallas_src>

<mosaic_0001>
module attributes {stable_mosaic.version = 11 : i64} {
  func.func @kernel(%arg0: i32, %arg1: i32, %arg2: i32, %arg3: memref<1x1x48x64xf32, #tpu.memory_space<vmem>>, %arg4: memref<1x1x48x64xf32, #tpu.memory_space<vmem>>, %arg5: memref<1x1xf32, #tpu.memory_space<smem>>, %arg6: memref<8x64xf32, #tpu.memory_space<vmem>>) attributes {dimension_semantics = [#tpu.dimension_semantics<arbitrary>, #tpu.dimension_semantics<arbitrary>, #tpu.dimension_semantics<arbitrary>], iteration_bounds = array<i64: 2, 4, 1>, scalar_prefetch = 0 : i64, scratch_operands = 1 : i64, tpu.core_type = #tpu.core_type<tc>, window_params = [{transform_indices = @transform_0, window_bounds = array<i64: 1, 1, 48, 64>}, {transform_indices = @transform_1, window_bounds = array<i64: 1, 1, 48, 64>}, {transform_indices = @transform_2, window_bounds = array<i64: 1, 1>}]} {
    %c0_i32 = arith.constant 0 : i32
    %0 = arith.cmpi eq, %arg0, %c0_i32 : i32
    %c1_i32 = arith.constant 1 : i32
    %1 = arith.cmpi eq, %arg0, %c1_i32 : i32
    %c0_i32_0 = arith.constant 0 : i32
    %2 = arith.cmpi eq, %arg1, %c0_i32_0 : i32
    %3 = arith.andi %0, %2 : i1
    %c3_i32 = arith.constant 3 : i32
    %4 = arith.cmpi eq, %arg1, %c3_i32 : i32
    %5 = arith.andi %1, %4 : i1
    %c0_i32_1 = arith.constant 0 : i32
    %6 = arith.cmpi eq, %arg2, %c0_i32_1 : i32
    %7 = arith.andi %3, %6 : i1
    %c0_i32_2 = arith.constant 0 : i32
    %8 = arith.cmpi eq, %arg2, %c0_i32_2 : i32
    %9 = arith.andi %5, %8 : i1
    %10 = arith.extui %7 : i1 to i32
    %c0_i32_3 = arith.constant 0 : i32
    %11 = arith.cmpi ne, %10, %c0_i32_3 : i32
    scf.if %11 {
      %cst_23 = arith.constant 0.000000e+00 : f32
      %45 = vector.broadcast %cst_23 : f32 to vector<8x64xf32>
      %c0_24 = arith.constant 0 : index
      %c0_25 = arith.constant 0 : index
      %46 = vector.load %arg6[%c0_24, %c0_25] : memref<8x64xf32, #tpu.memory_space<vmem>>, vector<8x64xf32>
      tpu.vector_store %arg6[%c0_24, %c0_25], %45 {strides = array<i32>} : memref<8x64xf32, #tpu.memory_space<vmem>>, vector<8x64xf32>,
    } else {
    }
    %c0 = arith.constant 0 : index
    %c0_4 = arith.constant 0 : index
    %c0_5 = arith.constant 0 : index
    %c0_6 = arith.constant 0 : index
    %12 = vector.load %arg3[%c0, %c0_4, %c0_5, %c0_6] : memref<1x1x48x64xf32, #tpu.memory_space<vmem>>, vector<1x1x48x64xf32>
    %13 = vector.shape_cast %12 : vector<1x1x48x64xf32> to vector<48x64xf32>
    %c0_7 = arith.constant 0 : index
    %c0_8 = arith.constant 0 : index
    %c0_9 = arith.constant 0 : index
    %c0_10 = arith.constant 0 : index
    %14 = vector.load %arg4[%c0_7, %c0_8, %c0_9, %c0_10] : memref<1x1x48x64xf32, #tpu.memory_space<vmem>>, vector<1x1x48x64xf32>
    %15 = vector.shape_cast %14 : vector<1x1x48x64xf32> to vector<48x64xf32>
    %cst = arith.constant 0.000000e+00 : f32
    %16 = vector.broadcast %cst : f32 to vector<48x64xf32>
    %17 = arith.maximumf %13, %16 : vector<48x64xf32>
    %cst_11 = arith.constant 0.000000e+00 : f32
    %18 = vector.broadcast %cst_11 : f32 to vector<48x64xf32>
    %19 = arith.subf %18, %15 : vector<48x64xf32>
    %cst_12 = arith.constant 0.000000e+00 : f32
    %20 = vector.broadcast %cst_12 : f32 to vector<48x64xf32>
    %21 = arith.maximumf %19, %20 : vector<48x64xf32>
    %22 = arith.addf %17, %21 : vector<48x64xf32>
    %23 = math.absf %13 : vector<48x64xf32>
    %cst_13 = arith.constant 0.000000e+00 : f32
    %24 = vector.broadcast %cst_13 : f32 to vector<48x64xf32>
    %25 = arith.subf %24, %23 : vector<48x64xf32>
    %26 = math.exp %25 : vector<48x64xf32>
    %cst_14 = arith.constant 1.000000e+00 : f32
    %27 = vector.broadcast %cst_14 : f32 to vector<48x64xf32>
    %28 = arith.addf %27, %26 : vector<48x64xf32>
    %29 = math.absf %15 : vector<48x64xf32>
    %cst_15 = arith.constant 0.000000e+00 : f32
    %30 = vector.broadcast %cst_15 : f32 to vector<48x64xf32>
    %31 = arith.subf %30, %29 : vector<48x64xf32>
    %32 = math.exp %31 : vector<48x64xf32>
    %cst_16 = arith.constant 1.000000e+00 : f32
    %33 = vector.broadcast %cst_16 : f32 to vector<48x64xf32>
    %34 = arith.addf %33, %32 : vector<48x64xf32>
    %35 = arith.mulf %28, %34 : vector<48x64xf32>
    %36 = math.log %35 : vector<48x64xf32>
    %37 = arith.addf %22, %36 : vector<48x64xf32>
    %c0_17 = arith.constant 0 : index
    %c0_18 = arith.constant 0 : index
    %38 = vector.load %arg6[%c0_17, %c0_18] : memref<8x64xf32, #tpu.memory_space<vmem>>, vector<8x64xf32>
    %39 = vector.shape_cast %37 : vector<48x64xf32> to vector<6x8x64xf32>
    %cst_19 = arith.constant dense<0.000000e+00> : vector<8x64xf32>
    %40 = vector.multi_reduction <add>, %39, %cst_19 [0] : vector<6x8x64xf32> to vector<8x64xf32>
    %41 = arith.addf %38, %40 : vector<8x64xf32>
    %c0_20 = arith.constant 0 : index
    %c0_21 = arith.constant 0 : index
    %42 = vector.load %arg6[%c0_20, %c0_21] : memref<8x64xf32, #tpu.memory_space<vmem>>, vector<8x64xf32>
    tpu.vector_store %arg6[%c0_20, %c0_21], %41 {strides = array<i32>} : memref<8x64xf32, #tpu.memory_space<vmem>>, vector<8x64xf32>,
    %43 = arith.extui %9 : i1 to i32
    %c0_i32_22 = arith.constant 0 : i32
    %44 = arith.cmpi ne, %43, %c0_i32_22 : i32
    scf.if %44 {
      %c0_23 = arith.constant 0 : index
      %c0_24 = arith.constant 0 : index
      %45 = vector.load %arg6[%c0_23, %c0_24] : memref<8x64xf32, #tpu.memory_space<vmem>>, vector<8x64xf32>
      %46 = vector.shape_cast %45 : vector<8x64xf32> to vector<1x8x64xf32>
      %cst_25 = arith.constant dense<0.000000e+00> : vector<1xf32>
      %47 = vector.multi_reduction <add>, %46, %cst_25 [1, 2] : vector<1x8x64xf32> to vector<1xf32>
      %48 = vector.shape_cast %47 : vector<1xf32> to vector<1x1x1xf32>
      %49 = vector.extract %48[0, 0, 0] : f32 from vector<1x1x1xf32>
      %cst_26 = arith.constant 4.06901054E-5 : f32
      %50 = arith.mulf %49, %cst_26 : f32
      %c0_27 = arith.constant 0 : index
      %c0_28 = arith.constant 0 : index
      %51 = memref.load %arg5[%c0_27, %c0_28] : memref<1x1xf32, #tpu.memory_space<smem>>
      memref.store %50, %arg5[%c0_27, %c0_28] : memref<1x1xf32, #tpu.memory_space<smem>>
    } else {
    }
    return
  }
  func.func @transform_0(%arg0: i32, %arg1: i32, %arg2: i32) -> (i32, i32, i32, i32) {
    %c0_i32 = arith.constant 0 : i32
    %c0_i32_0 = arith.constant 0 : i32
    return %arg0, %arg1, %arg2, %c0_i32 : i32, i32, i32, i32
  }
  func.func @transform_1(%arg0: i32, %arg1: i32, %arg2: i32) -> (i32, i32, i32, i32) {
    %c0_i32 = arith.constant 0 : i32
    %c0_i32_0 = arith.constant 0 : i32
    return %arg0, %arg1, %arg2, %c0_i32 : i32, i32, i32, i32
  }
  func.func @transform_2(%arg0: i32, %arg1: i32, %arg2: i32) -> (i32, i32) {
    %c0_i32 = arith.constant 0 : i32
    %c0_i32_0 = arith.constant 0 : i32
    %c0_i32_1 = arith.constant 0 : i32
    return %c0_i32, %c0_i32_0 : i32, i32
  }
}

</mosaic_0001>

<llo_original>
// kernel: tpu_custom_call.1
$region0: #{tpu_custom_call.1}
  #allocation0 [shape = 'u32[]', space=smem, size = 0x4, offset = 0x4, fixed_abs, tag = 'smem constant byte address 0x4 - core index']
  #allocation1 [shape = 'u32[72,128]{1,0:T(1,128)}', space=vmem, size = 0x9000, scoped, tag = 'internal scratch']
  #allocation2 [shape = 'f32[8,64]{1,0:T(8,128)}', space=vmem, size = 0x1000, scoped, tag = 'scratch operand']
  %s0 = inlined_call_operand.hbm [shape: f32[2,4,48,64], index: 0, kind: input, shape index: {}]
  %s1 = inlined_call_operand.hbm [shape: f32[2,4,48,64], index: 1, kind: input, shape index: {}]
  %s2 = inlined_call_operand.hbm [shape: f32[1,1], index: 2, kind: output, shape index: {}]
  %s3 = sld [smem:[#allocation0]]
  $region57: #{tpu_custom_call.1} parent=0
    _
  %s5 = ssub.s32 1, %s3
  %s6 = scalar_select 0, %s5, %s3
  $region1: #{tpu_custom_call.1} parent=0
    #allocation3 [shape = 'u8[49152]{0}', space=vmem, size = 0xc000, scoped, tag = 'input window, operand 0']
    #allocation4 [shape = 's32[2]{0}', space=sflag, size = 0x8, scoped, tag = 'scoped memory for tpu_custom_call.1']
    #allocation5 [shape = 's32[2]{0}', space=sflag, size = 0x8, scoped, tag = 'scoped memory for tpu_custom_call.1']
    #allocation6 [shape = 'u8[49152]{0}', space=vmem, size = 0xc000, scoped, tag = 'input window, operand 1']
    #allocation7 [shape = 's32[2]{0}', space=sflag, size = 0x8, scoped, tag = 'scoped memory for tpu_custom_call.1']
    #allocation8 [shape = 'u8[512]{0}', space=smem, size = 0x200, scoped, tag = 'output window, operand 0, single buffered']
    %7 = vsyncpa [#allocation4], 0
    %s8 = scalar_lea.sflag [#allocation4], 1
    %9 = vsyncpa %s8, 0
    %10 = vsyncpa [#allocation7], 0
    %s11 = scalar_lea.sflag [#allocation7], 1
    %12 = vsyncpa %s11, 0
    %13 = vsyncpa [#allocation5], 0
    loop: start=0, step=1, limit=10
    $region2: #{tpu_custom_call.1} parent=1 // loop_pre_header
      _
    $region3: #{tpu_custom_call.1} parent=1 // loop_header
      %s15 = sphi 0, %s19
      %p16 = scmp.ge.s32.totalorder %s15, 10
      %s22 = sphi 0, %s41
      %s23 = sphi 0, %s37
      %s24 = sphi 0, %s33
      %s25 = sphi 0, %s22
      %s26 = sphi 0, %s23
      %s27 = sphi 0, %s24
      %s28 = sphi 0, %s25
      %s29 = sphi 0, %s26
      %s30 = sphi 0, %s27
      %s48 = sphi 0, %s50
      %s51 = sphi 0, %s48
      %s52 = sphi 0, %s51
      %s68 = sphi 0, %s52
      %s78 = sphi 0, %s80
      %s81 = sphi 0, %s78
      %s82 = sphi 0, %s81
      %s98 = sphi 0, %s82
      %s102 = sphi 0, %s102
      %s104 = sphi 0, %s102
      %s105 = sphi 0, %s104
      %s119 = sphi 0, %s105
    $region4: #{tpu_custom_call.1} parent=1 // loop_header_branch
      %18 = sbr.rel (%p16) target = $region8
    $region5: #{tpu_custom_call.1} parent=1 // loop_body
      %s20 = ssub.s32 %s15, 1
      %s21 = ssub.s32 %s15, 2
      %s31 = sadd.s32 1, %s24
      %p32 = scmp.ge.s32.totalorder %s31, 1
      %s33 = scalar_select %p32, 0, %s31
      %s34 = sadd.s32 1, %s23
      %s35 = scalar_select %p32, %s34, %s23
      %p36 = scmp.ge.s32.totalorder %s35, 4
      %s37 = scalar_select %p36, 0, %s35
      %s38 = sadd.s32 1, %s22
      %s39 = scalar_select %p36, %s38, %s22
      %p40 = scmp.ge.s32.totalorder %s39, 2
      %s41 = scalar_select %p40, 0, %s39
      %s42 = ssub.s32 %s22, %s41
      %s43 = ssub.s32 %s23, %s37
      %s44 = sor.u32 %s42, %s43
      %s45 = ssub.s32 %s24, %s33
      %s46 = sor.u32 %s44, %s45
      %p47 = scmp.eq.s32.totalorder %s46, 0
      %s49 = sadd.s32 %s48, 1
      %s50 = scalar_select %p47, %s48, %s49
      %p53 = pneg %p47
      %p54 = scmp.eq.s32.totalorder %s15, 7
      %p55 = por %p53, %p54
      %p56 = scmp.ne.s32.totalorder %s48, %s51
      %p57 = scmp.eq.s32.totalorder %s15, 0
      %p58 = por %p56, %p57
      %p59 = scmp.ne.s32.totalorder %s48, %s51
      %p60 = scmp.eq.s32.totalorder %s20, 7
      %p61 = por %p59, %p60
      %p62 = scmp.ne.s32.totalorder %s51, %s52
      %p63 = scmp.eq.s32.totalorder %s20, 0
      %p64 = por %p62, %p63
      %p65 = scmp.ne.s32.totalorder %s51, %s52
      %p66 = scmp.eq.s32.totalorder %s21, 7
      %p67 = por %p65, %p66
      %p69 = scmp.ne.s32.totalorder %s52, %s68
      %p70 = scmp.eq.s32.totalorder %s21, 0
      %p71 = por %p69, %p70
      %s72 = ssub.s32 %s22, %s41
      %s73 = ssub.s32 %s23, %s37
      %s74 = sor.u32 %s72, %s73
      %s75 = ssub.s32 %s24, %s33
      %s76 = sor.u32 %s74, %s75
      %p77 = scmp.eq.s32.totalorder %s76, 0
      %s79 = sadd.s32 %s78, 1
      %s80 = scalar_select %p77, %s78, %s79
      %p83 = pneg %p77
      %p84 = scmp.eq.s32.totalorder %s15, 7
      %p85 = por %p83, %p84
      %p86 = scmp.ne.s32.totalorder %s78, %s81
      %p87 = scmp.eq.s32.totalorder %s15, 0
      %p88 = por %p86, %p87
      %p89 = scmp.ne.s32.totalorder %s78, %s81
      %p90 = scmp.eq.s32.totalorder %s20, 7
      %p91 = por %p89, %p90
      %p92 = scmp.ne.s32.totalorder %s81, %s82
      %p93 = scmp.eq.s32.totalorder %s20, 0
      %p94 = por %p92, %p93
      %p95 = scmp.ne.s32.totalorder %s81, %s82
      %p96 = scmp.eq.s32.totalorder %s21, 7
      %p97 = por %p95, %p96
      %p99 = scmp.ne.s32.totalorder %s82, %s98
      %p100 = scmp.eq.s32.totalorder %s21, 0
      %p101 = por %p99, %p100
      %s103 = sadd.s32 %s102, 1
      %p106 = scmp.eq.s32.totalorder %s15, 7
      %p107 = scmp.ne.s32.totalorder %s102, %s104
      %p108 = scmp.eq.s32.totalorder %s15, 0
      %p109 = por %p107, %p108
      %p110 = scmp.ne.s32.totalorder %s102, %s104
      %p111 = scmp.eq.s32.totalorder %s20, 7
      %p112 = por %p110, %p111
      %p113 = scmp.ne.s32.totalorder %s104, %s105
      %p114 = scmp.eq.s32.totalorder %s20, 0
      %p115 = por %p113, %p114
      %p116 = scmp.ne.s32.totalorder %s104, %s105
      %p117 = scmp.eq.s32.totalorder %s21, 7
      %p118 = por %p116, %p117
      %p120 = scmp.ne.s32.totalorder %s105, %s119
      %p121 = scmp.eq.s32.totalorder %s21, 0
      %p122 = por %p120, %p121
      %p123 = scmp.le.s32.totalorder 1, %s15
      %p124 = scmp.lt.s32.totalorder %s15, 9
      %p125 = pnand %p123, %p124
      %p126 = pneg %p125
      // Predicated region
      $region9: #{tpu_custom_call.1} parent=5 // pred_check
        _
      $region10: #{tpu_custom_call.1} parent=5 // pred_check_branch
        %128 = sbr.rel (%p125) target = $region12
      $region11: #{tpu_custom_call.1} parent=5 // pred_region
        %s129 = ssub.s32 %s15, 1
      $region12: #{tpu_custom_call.1} parent=5 // pred_fallthru
        _
      %p130 = scmp.lt.s32.totalorder %s15, 8
      // Predicated region
      $region13: #{tpu_custom_call.1} parent=5 // pred_check
        %p131 = pneg %p130
      $region14: #{tpu_custom_call.1} parent=5 // pred_check_branch
        %133 = sbr.rel (%p131) target = $region16
      $region15: #{tpu_custom_call.1} parent=5 // pred_region
        // Predicated region
        $region17: #{tpu_custom_call.1} parent=15 // pred_check
          %p134 = pneg %p58
        $region18: #{tpu_custom_call.1} parent=15 // pred_check_branch
          %136 = sbr.rel (%p134) target = $region20
        $region19: #{tpu_custom_call.1} parent=15 // pred_region
          %s137 = sand.u32 %s48, 1
          %s138 = scalar_lea.sflag [#allocation4], %s137
          %s139 = sand.u32 %s48, 1
          %s140 = smul.addr %s139, 48
          %s141 = scalar_lea.vmem [#allocation3], %s140
          %s142 = smul.u32 6, %s24
          %144 = vsyncadd %s138, 0
          %s145 = smul.addr %s23, 6
          %s146 = sadd.s32 %s142, %s145
          %s147 = smul.addr %s22, 24
          %s148 = sadd.s32 %s146, %s147
          %s149 = smul.addr %s148, 8
          %s150 = scalar_lea.hbm %s0, %s149
          %s151 = sshll.u32 %s150, 4
          %s152 = int_to_ptr.hbm [resolvable:$true] %s151
          %s153 = sshll.u32 %s141, 4
          %s154 = int_to_ptr.vmem [resolvable:$true] %s153
          %159 = dma.hbm_to_vmem [thread:$0]  %s152, 768, %s154, %s138, 128, 128, 8
        $region20: #{tpu_custom_call.1} parent=15 // pred_fallthru
          _
        // Predicated region
        $region21: #{tpu_custom_call.1} parent=15 // pred_check
          %p160 = pneg %p88
        $region22: #{tpu_custom_call.1} parent=15 // pred_check_branch
          %162 = sbr.rel (%p160) target = $region24
        $region23: #{tpu_custom_call.1} parent=15 // pred_region
          %s163 = sand.u32 %s78, 1
          %s164 = scalar_lea.sflag [#allocation7], %s163
          %s165 = sand.u32 %s78, 1
          %s166 = smul.addr %s165, 48
          %s167 = scalar_lea.vmem [#allocation6], %s166
          %s168 = smul.u32 6, %s24
          %170 = vsyncadd %s164, 0
          %s171 = smul.addr %s23, 6
          %s172 = sadd.s32 %s168, %s171
          %s173 = smul.addr %s22, 24
          %s174 = sadd.s32 %s172, %s173
          %s175 = smul.addr %s174, 8
          %s176 = scalar_lea.hbm %s1, %s175
          %s177 = sshll.u32 %s176, 4
          %s178 = int_to_ptr.hbm [resolvable:$true] %s177
          %s179 = sshll.u32 %s167, 4
          %s180 = int_to_ptr.vmem [resolvable:$true] %s179
          %185 = dma.hbm_to_vmem [thread:$0]  %s178, 768, %s180, %s164, 128, 128, 8
        $region24: #{tpu_custom_call.1} parent=15 // pred_fallthru
          _
      $region16: #{tpu_custom_call.1} parent=5 // pred_fallthru
        _
      %p186 = scmp.le.s32.totalorder 1, %s15
      %p187 = scmp.lt.s32.totalorder %s15, 9
      %p188 = pnand %p186, %p187
      %p189 = pneg %p188
      // Predicated region
      $region25: #{tpu_custom_call.1} parent=5 // pred_check
        _
      $region26: #{tpu_custom_call.1} parent=5 // pred_check_branch
        %191 = sbr.rel (%p188) target = $region28
      $region27: #{tpu_custom_call.1} parent=5 // pred_region
        %s192 = ssub.s32 %s15, 1
        %s193 = sand.u32 %s51, 1
        %s194 = scalar_lea.sflag [#allocation4], %s193
        %s195 = sand.u32 %s51, 1
        %s196 = smul.addr %s195, 48
        %s197 = scalar_lea.vmem [#allocation3], %s196
        // Predicated region
        $region29: #{tpu_custom_call.1} parent=27 // pred_check
          %p198 = pneg %p64
        $region30: #{tpu_custom_call.1} parent=27 // pred_check_branch
          %200 = sbr.rel (%p198) target = $region32
        $region31: #{tpu_custom_call.1} parent=27 // pred_region
          %202 = dma.done %s194, 768
        $region32: #{tpu_custom_call.1} parent=27 // pred_fallthru
          _
        %s203 = sand.u32 %s81, 1
        %s204 = scalar_lea.sflag [#allocation7], %s203
        %s205 = sand.u32 %s81, 1
        %s206 = smul.addr %s205, 48
        %s207 = scalar_lea.vmem [#allocation6], %s206
        // Predicated region
        $region33: #{tpu_custom_call.1} parent=27 // pred_check
          %p208 = pneg %p94
        $region34: #{tpu_custom_call.1} parent=27 // pred_check_branch
          %210 = sbr.rel (%p208) target = $region36
        $region35: #{tpu_custom_call.1} parent=27 // pred_region
          %212 = dma.done %s204, 768
        $region36: #{tpu_custom_call.1} parent=27 // pred_fallthru
          _
        %s213 = sand.u32 %s51, 1
        %s214 = scalar_lea.sflag [#allocation4], %s213
        %s215 = sand.u32 %s51, 1
        %s216 = smul.addr %s215, 48
        %s217 = scalar_lea.vmem [#allocation3], %s216
        %p218 = pneg %p64
        %p219 = pneg %p61
        %s220 = sand.u32 %s81, 1
        %s221 = scalar_lea.sflag [#allocation7], %s220
        %s222 = sand.u32 %s81, 1
        %s223 = smul.addr %s222, 48
        %s224 = scalar_lea.vmem [#allocation6], %s223
        %p225 = pneg %p94
        %p226 = pneg %p91
        %p227 = pneg %p115
        %p228 = pneg %p112
        %s229 = smul.u32 6, %s27
        %s230 = smul.u32 6, %s27
        %p231 = scmp.eq.s32.totalorder %s25, 0
        %p232 = scmp.eq.s32.totalorder %s25, 1
        %p233 = scmp.eq.s32.totalorder %s26, 0
        %p234 = pnand %p231, %p233
        %p235 = pneg %p234
        %p236 = scmp.eq.s32.totalorder %s26, 3
        %p237 = pnand %p232, %p236
        %p238 = pneg %p237
        %p239 = scmp.eq.s32.totalorder %s27, 0
        %p240 = pnand %p235, %p239
        %p241 = pneg %p240
        %p242 = pnand %p238, %p239
        %p243 = pneg %p242
        // Predicated region
        $region37: #{tpu_custom_call.1} parent=27 // pred_check
          _
        $region38: #{tpu_custom_call.1} parent=27 // pred_check_branch
          %245 = sbr.rel (%p240) target = $region40
        $region39: #{tpu_custom_call.1} parent=27 // pred_region
          %vm246 = vcmask 523264
          %247 = vst.msk [vmem:[#allocation2] sm:$0xff] %vm246, 0.0
        $region40: #{tpu_custom_call.1} parent=27 // pred_fallthru
          _
        %v248 = vld [vmem:[%s197] sm:$0xff]
        %v249 = vld [vmem:[%s197 + $0x8] sm:$0xff]
        %v250 = vld [vmem:[%s197 + $0x10] sm:$0xff]
        %v251 = vld [vmem:[%s197 + $0x18] sm:$0xff]
        %v252 = vld [vmem:[%s197 + $0x20] sm:$0xff]
        %v253 = vld [vmem:[%s197 + $0x28] sm:$0xff]
        %v254 = vld [vmem:[%s207] sm:$0xff]
        %v255 = vld [vmem:[%s207 + $0x8] sm:$0xff]
        %v256 = vld [vmem:[%s207 + $0x10] sm:$0xff]
        %v257 = vld [vmem:[%s207 + $0x18] sm:$0xff]
        %v258 = vld [vmem:[%s207 + $0x20] sm:$0xff]
        %v259 = vld [vmem:[%s207 + $0x28] sm:$0xff]
        %v260 = vmax.f32 %v248, 0.0
        %v261 = vmax.f32 %v249, 0.0
        %v262 = vmax.f32 %v250, 0.0
        %v263 = vmax.f32 %v251, 0.0
        %v264 = vmax.f32 %v252, 0.0
        %v265 = vmax.f32 %v253, 0.0
        %v266 = vsub.f32 0.0, %v254
        %v267 = vsub.f32 0.0, %v255
        %v268 = vsub.f32 0.0, %v256
        %v269 = vsub.f32 0.0, %v257
        %v270 = vsub.f32 0.0, %v258
        %v271 = vsub.f32 0.0, %v259
        %v272 = vmax.f32 %v266, 0.0
        %v273 = vmax.f32 %v267, 0.0
        %v274 = vmax.f32 %v268, 0.0
        %v275 = vmax.f32 %v269, 0.0
        %v276 = vmax.f32 %v270, 0.0
        %v277 = vmax.f32 %v271, 0.0
        %v278 = vadd.f32 %v260, %v272
        %v279 = vadd.f32 %v261, %v273
        %v280 = vadd.f32 %v262, %v274
        %v281 = vadd.f32 %v263, %v275
        %v282 = vadd.f32 %v264, %v276
        %v283 = vadd.f32 %v265, %v277
        %v284 = vand.u32 2147483647, %v248
        %v285 = vand.u32 2147483647, %v249
        %v286 = vand.u32 2147483647, %v250
        %v287 = vand.u32 2147483647, %v251
        %v288 = vand.u32 2147483647, %v252
        %v289 = vand.u32 2147483647, %v253
        %v290 = vsub.f32 0.0, %v284
        %v291 = vsub.f32 0.0, %v285
        %v292 = vsub.f32 0.0, %v286
        %v293 = vsub.f32 0.0, %v287
        %v294 = vsub.f32 0.0, %v288
        %v295 = vsub.f32 0.0, %v289
        %v296 = vmul.f32 %v290, 1.442695
        %v297 = vpow.pop %v296
        %v298 = vmul.f32 %v291, 1.442695
        %v299 = vpow.pop %v298
        %v300 = vmul.f32 %v292, 1.442695
        %v301 = vpow.pop %v300
        %v302 = vmul.f32 %v293, 1.442695
        %v303 = vpow.pop %v302
        %v304 = vmul.f32 %v294, 1.442695
        %v305 = vpow.pop %v304
        %v306 = vmul.f32 %v295, 1.442695
        %v307 = vpow.pop %v306
        %v308 = vadd.f32 %v297, 1.0
        %v309 = vadd.f32 %v299, 1.0
        %v310 = vadd.f32 %v301, 1.0
        %v311 = vadd.f32 %v303, 1.0
        %v312 = vadd.f32 %v305, 1.0
        %v313 = vadd.f32 %v307, 1.0
        %v314 = vand.u32 2147483647, %v254
        %v315 = vand.u32 2147483647, %v255
        %v316 = vand.u32 2147483647, %v256
        %v317 = vand.u32 2147483647, %v257
        %v318 = vand.u32 2147483647, %v258
        %v319 = vand.u32 2147483647, %v259
        %v320 = vsub.f32 0.0, %v314
        %v321 = vsub.f32 0.0, %v315
        %v322 = vsub.f32 0.0, %v316
        %v323 = vsub.f32 0.0, %v317
        %v324 = vsub.f32 0.0, %v318
        %v325 = vsub.f32 0.0, %v319
        %v326 = vmul.f32 %v320, 1.442695
        %v327 = vpow.pop %v326
        %v328 = vmul.f32 %v321, 1.442695
        %v329 = vpow.pop %v328
        %v330 = vmul.f32 %v322, 1.442695
        %v331 = vpow.pop %v330
        %v332 = vmul.f32 %v323, 1.442695
        %v333 = vpow.pop %v332
        %v334 = vmul.f32 %v324, 1.442695
        %v335 = vpow.pop %v334
        %v336 = vmul.f32 %v325, 1.442695
        %v337 = vpow.pop %v336
        %v338 = vadd.f32 %v327, 1.0
        %v339 = vadd.f32 %v329, 1.0
        %v340 = vadd.f32 %v331, 1.0
        %v341 = vadd.f32 %v333, 1.0
        %v342 = vadd.f32 %v335, 1.0
        %v343 = vadd.f32 %v337, 1.0
        %v344 = vmul.f32 %v308, %v338
        %v345 = vmul.f32 %v309, %v339
        %v346 = vmul.f32 %v310, %v340
        %v347 = vmul.f32 %v311, %v341
        %v348 = vmul.f32 %v312, %v342
        %v349 = vmul.f32 %v313, %v343
        %v350 = vlog2.pop %v344
        %v351 = vmul.f32 %v350, 0.6931472
        %v352 = vlog2.pop %v345
        %v353 = vmul.f32 %v352, 0.6931472
        %v354 = vlog2.pop %v346
        %v355 = vmul.f32 %v354, 0.6931472
        %v356 = vlog2.pop %v347
        %v357 = vmul.f32 %v356, 0.6931472
        %v358 = vlog2.pop %v348
        %v359 = vmul.f32 %v358, 0.6931472
        %v360 = vlog2.pop %v349
        %v361 = vmul.f32 %v360, 0.6931472
        %v362 = vadd.f32 %v278, %v351
        %v363 = vadd.f32 %v279, %v353
        %v364 = vadd.f32 %v280, %v355
        %v365 = vadd.f32 %v281, %v357
        %v366 = vadd.f32 %v282, %v359
        %v367 = vadd.f32 %v283, %v361
        %v368 = vld [vmem:[#allocation2] sm:$0xff]
        %vm369 = vcmask 523264
        %v370 = vsel %vm369, %v362, 0.0
        %v371 = vsel %vm369, %v363, 0.0
        %v372 = vadd.f32 %v370, %v371
        %v373 = vsel %vm369, %v364, 0.0
        %v374 = vadd.f32 %v372, %v373
        %v375 = vsel %vm369, %v365, 0.0
        %v376 = vadd.f32 %v374, %v375
        %v377 = vsel %vm369, %v366, 0.0
        %v378 = vadd.f32 %v376, %v377
        %v379 = vsel %vm369, %v367, 0.0
        %v380 = vadd.f32 %v378, %v379
        %v381 = vadd.f32 %v368, %v380
        %382 = vst.msk [vmem:[#allocation2] sm:$0xff] %vm369, %v381
        // Predicated region
        $region41: #{tpu_custom_call.1} parent=27 // pred_check
          _
        $region42: #{tpu_custom_call.1} parent=27 // pred_check_branch
          %384 = sbr.rel (%p242) target = $region44
        $region43: #{tpu_custom_call.1} parent=27 // pred_region
          %v385 = vld [vmem:[#allocation2] sm:$0xff]
          %v386 = vsel %vm369, %v385, 0.0
          %387 = vadd.xlane.f32.xlu0 %v386
          %v388 = vpop.xlane.xlu0 %387
          %v389 = vrot.slane %v388, 4
          %v390 = vadd.f32 %v388, %v389
          %v391 = vrot.slane %v390, 2
          %v392 = vadd.f32 %v390, %v391
          %v393 = vrot.slane %v392, 1
          %v394 = vadd.f32 %v392, %v393
          %s395 = vtos %v394
          %s396 = smul.f32 %s395, 4.0690105e-05
          %s397 = scalar_lea.smem [#allocation8], 0
          %398 = sst [smem:[%s397]] %s396
        $region44: #{tpu_custom_call.1} parent=27 // pred_fallthru
          _
        // Predicated region
        $region45: #{tpu_custom_call.1} parent=27 // pred_check
          %p399 = pneg %p112
        $region46: #{tpu_custom_call.1} parent=27 // pred_check_branch
          %401 = sbr.rel (%p399) target = $region48
        $region47: #{tpu_custom_call.1} parent=27 // pred_region
          %403 = vsyncadd [#allocation5], 0
          %s405 = sshll.u32 %s2, 4
          %s406 = int_to_ptr.hbm [resolvable:$true] %s405
          %408 = dma.smem_to_hbm [#allocation8], 16, %s406, [#allocation5]
        $region48: #{tpu_custom_call.1} parent=27 // pred_fallthru
          _
        // Predicated region
        $region49: #{tpu_custom_call.1} parent=27 // pred_check
          %p409 = pneg %p112
        $region50: #{tpu_custom_call.1} parent=27 // pred_check_branch
          %411 = sbr.rel (%p409) target = $region52
        $region51: #{tpu_custom_call.1} parent=27 // pred_region
          %413 = dma.done [#allocation5], 16
        $region52: #{tpu_custom_call.1} parent=27 // pred_fallthru
          _
        %414 = sfence
      $region28: #{tpu_custom_call.1} parent=5 // pred_fallthru
        _
      %p415 = scmp.le.s32.totalorder 2, %s15
      // Predicated region
      $region53: #{tpu_custom_call.1} parent=5 // pred_check
        %p416 = pneg %p415
      $region54: #{tpu_custom_call.1} parent=5 // pred_check_branch
        %418 = sbr.rel (%p416) target = $region56
      $region55: #{tpu_custom_call.1} parent=5 // pred_region
        %s419 = ssub.s32 %s15, 2
      $region56: #{tpu_custom_call.1} parent=5 // pred_fallthru
        _
    $region6: #{tpu_custom_call.1} parent=1 // loop_footer
      %s19 = sadd.s32 1, %s15
    $region7: #{tpu_custom_call.1} parent=1 // loop_footer_branch
      %14 = sbr.rel target = $region3
    $region8: #{tpu_custom_call.1} parent=1 // loop_exit
      _
    %420 = vsyncpa [#allocation4], 1
    %s421 = scalar_lea.sflag [#allocation4], 1
    %422 = vsyncpa %s421, 1
    %423 = vsyncpa [#allocation7], 1
    %s424 = scalar_lea.sflag [#allocation7], 1
    %425 = vsyncpa %s424, 1
    %426 = vsyncpa [#allocation5], 1
    %s427 = scalar_lea.sflag [#allocation5], 1
    %428 = vsyncpa %s427, 1

</llo_original>
